<compile_context>
chip_gen: v7x
topology: tpu7x:2x2x1
jax: 0.10.0
libtpu: 0.0.40
codegen_flags: <defaults>
</compile_context>

<pallas_src>
import functools

import jax
import jax.numpy as jnp
import numpy as np
from jax import lax
from jax.experimental import pallas as pl
from jax.experimental.pallas import tpu as pltpu


def _convT_fused_kernel(x_ref, w_ref, b_ref, o_ref, lhs_ref, *, shifts, ci_blk, scale):
    """One batch image per grid step.

    x_ref:   (1, CIp, Lflat)        dilated+padded input, spatial dims flattened
    w_ref:   (CO, KH*KW*CIp)        stacked per-tap weights (already spatially flipped)
    b_ref:   (CO, 1)                combined conv bias + extra bias
    o_ref:   (1, CO, Mext)          channel-major, lane-dense extended output (Mext = OH*Wp)
    lhs_ref: (KH*KW*CIp, Mext)      VMEM scratch holding the stacked shifted patches
    """
    mext = o_ref.shape[2]

    xfull = x_ref[0]                                  # (CIp, Lflat), loaded once
    for k, off in enumerate(shifts):                  # static unroll over the KH*KW taps
        lhs_ref[k * ci_blk:(k + 1) * ci_blk, :] = xfull[:, off:off + mext]

    # Single MXU contraction over (tap, ci).
    z = jnp.dot(w_ref[...], lhs_ref[...], preferred_element_type=jnp.float32)
    z = z + b_ref[...]                                # (CO,1) broadcast over lanes

    if scale > 0:
        # clamp(x,0,1)*s, clamp(.,0,1), /s  ==  clamp(x, 0, min(1, 1/s))  for s > 0
        z = jnp.clip(z, 0.0, min(1.0, 1.0 / scale))
    else:
        # literal op sequence fallback (matches the original math for s <= 0)
        z = jnp.clip(z, 0.0, 1.0) * scale
        z = jnp.clip(z, 0.0, 1.0) / scale
    o_ref[0] = z.astype(o_ref.dtype)


def conv_transpose_fused(x, w, conv_b, extra_b, stride, padding, output_padding,
                         scaling_factor):
    """x: (N, CI, H, W); w: (CI, CO, KH, KW) [PyTorch ConvTranspose2d layout];
    conv_b: (CO,); extra_b: (CO, 1, 1). Returns (N, CO, OH, OW) float like x."""
    N, CI, H, W = x.shape
    _, CO, KH, KW = w.shape
    s, p, op = stride, padding, output_padding
    OH = (H - 1) * s - 2 * p + KH + op
    OW = (W - 1) * s - 2 * p + KW + op

    # --- single fused XLA op: zero-insertion (interior pad) + edge padding + CI pad ---
    plo_h, phi_h = KH - 1 - p, KH - 1 - p + op
    plo_w, phi_w = KW - 1 - p, KW - 1 - p + op
    Hp = (H - 1) * s + 1 + plo_h + phi_h              # = OH + KH - 1
    Wp = (W - 1) * s + 1 + plo_w + phi_w              # = OW + KW - 1

    CIp = -(-CI // 8) * 8                             # pad channels to a sublane multiple
    Mext = OH * Wp                                    # extended flat output per image
    max_shift = (KH - 1) * Wp + (KW - 1)
    deficit = Mext + max_shift - Hp * Wp              # extra zero rows so slices stay in-bounds
    extra_rows = max(0, -(-deficit // Wp))

    xp = lax.pad(x, jnp.array(0.0, dtype=x.dtype),
                 ((0, 0, 0),
                  (0, CIp - CI, 0),
                  (plo_h, phi_h + extra_rows, s - 1),
                  (plo_w, phi_w, s - 1)))
    Lflat = (Hp + extra_rows) * Wp
    xflat = xp.reshape(N, CIp, Lflat)                 # free reshape (contiguous dims)

    # flipped per-tap weights: wk[kh*KW+kw, co, ci] = w[ci, co, KH-1-kh, KW-1-kw]
    wk = jnp.flip(w, axis=(2, 3)).transpose(2, 3, 1, 0).reshape(KH * KW, CO, CI)
    wk = jnp.pad(wk, ((0, 0), (0, 0), (0, CIp - CI)))
    w2d = wk.transpose(1, 0, 2).reshape(CO, KH * KW * CIp)   # matches lhs stacking order
    bias = (conv_b + extra_b.reshape(-1)).reshape(CO, 1)

    shifts = tuple(kh * Wp + kw for kh in range(KH) for kw in range(KW))

    out_ext = pl.pallas_call(
        functools.partial(_convT_fused_kernel, shifts=shifts, ci_blk=CIp,
                          scale=float(scaling_factor)),
        out_shape=jax.ShapeDtypeStruct((N, CO, Mext), x.dtype),
        grid=(N,),
        in_specs=[
            pl.BlockSpec((1, CIp, Lflat), lambda n: (n, 0, 0)),
            pl.BlockSpec((CO, KH * KW * CIp), lambda n: (0, 0)),
            pl.BlockSpec((CO, 1), lambda n: (0, 0)),
        ],
        out_specs=pl.BlockSpec((1, CO, Mext), lambda n: (n, 0, 0)),
        scratch_shapes=[pltpu.VMEM((KH * KW * CIp, Mext), jnp.float32)],
        compiler_params=pltpu.CompilerParams(dimension_semantics=("parallel",)),
    )(xflat, w2d, bias)

    # drop the KW-1 junk columns per row: (N,CO,OH*Wp) -> (N,CO,OH,Wp) [free] -> [..., :OW]
    out = out_ext.reshape(N, CO, OH, Wp)[..., :OW]
    return out


if __name__ == "__main__":
    # Small shapes consistent with the module's forward.
    N, CI, CO = 2, 4, 8
    K, S, P, OP = 3, 2, 1, 1
    H = Wsp = 16
    scaling_factor = 2.0

    key = jax.random.PRNGKey(0)
    k1, k2, k3, k4 = jax.random.split(key, 4)
    x = jax.random.normal(k1, (N, CI, H, Wsp), jnp.float32)
    w = jax.random.normal(k2, (CI, CO, K, K), jnp.float32) * 0.1      # ConvTranspose2d weight
    conv_b = jax.random.normal(k3, (CO,), jnp.float32) * 0.1           # ConvTranspose2d bias
    extra_b = jax.random.normal(k4, (CO, 1, 1), jnp.float32)           # Model.bias (bias_shape)

    fwd = jax.jit(functools.partial(conv_transpose_fused, stride=S, padding=P,
                                    output_padding=OP, scaling_factor=scaling_factor))
    out = jax.block_until_ready(fwd(x, w, conv_b, extra_b))

    # Pure-JAX reference for the whole forward pass.
    w_flip = jnp.flip(w, axis=(2, 3)).transpose(1, 0, 2, 3)            # (CO, CI, K, K)
    ref = lax.conv_general_dilated(
        x, w_flip, window_strides=(1, 1),
        padding=[(K - 1 - P, K - 1 - P + OP), (K - 1 - P, K - 1 - P + OP)],
        lhs_dilation=(S, S),
        dimension_numbers=("NCHW", "OIHW", "NCHW"))
    ref = ref + conv_b.reshape(1, CO, 1, 1) + extra_b.reshape(1, CO, 1, 1)
    ref = jnp.clip(ref, 0.0, 1.0) * scaling_factor
    ref = jnp.clip(ref, 0.0, 1.0) / scaling_factor

    OH = (H - 1) * S - 2 * P + K + OP
    assert out.shape == (N, CO, OH, OH)
    np.testing.assert_allclose(np.asarray(out), np.asarray(ref), atol=1e-4, rtol=1e-4)
    print("KERNEL_OK")
</pallas_src>

<mosaic_0001>
module attributes {stable_mosaic.version = 11 : i64} {
  func.func @_convT_fused_kernel(%arg0: i32, %arg1: memref<1x8x1190xf32, #tpu.memory_space<vmem>>, %arg2: memref<8x72xf32, #tpu.memory_space<vmem>>, %arg3: memref<8x1xf32, #tpu.memory_space<vmem>>, %arg4: memref<1x8x1088xf32, #tpu.memory_space<vmem>>, %arg5: memref<72x1088xf32, #tpu.memory_space<vmem>>) attributes {dimension_semantics = [#tpu.dimension_semantics<parallel>], iteration_bounds = array<i64: 2>, scalar_prefetch = 0 : i64, scratch_operands = 1 : i64, tpu.core_type = #tpu.core_type<tc>, window_params = [{transform_indices = @transform_0, window_bounds = array<i64: 1, 8, 1190>}, {pipeline_mode = #tpu.pipeline_mode<synchronous>, transform_indices = @transform_1, window_bounds = array<i64: 8, 72>}, {pipeline_mode = #tpu.pipeline_mode<synchronous>, transform_indices = @transform_2, window_bounds = array<i64: 8, 1>}, {transform_indices = @transform_3, window_bounds = array<i64: 1, 8, 1088>}]} {
    %c0 = arith.constant 0 : index
    %c0_0 = arith.constant 0 : index
    %c0_1 = arith.constant 0 : index
    %0 = vector.load %arg1[%c0, %c0_0, %c0_1] : memref<1x8x1190xf32, #tpu.memory_space<vmem>>, vector<1x8x1190xf32>
    %1 = vector.shape_cast %0 : vector<1x8x1190xf32> to vector<8x1190xf32>
    %2 = vector.extract_strided_slice %1 {offsets = [0, 0], sizes = [8, 1088], strides = [1, 1]} : vector<8x1190xf32> to vector<8x1088xf32>
    %c0_2 = arith.constant 0 : index
    %c0_3 = arith.constant 0 : index
    %3 = vector.load %arg5[%c0_2, %c0_3] : memref<72x1088xf32, #tpu.memory_space<vmem>>, vector<8x1088xf32>
    tpu.vector_store %arg5[%c0_2, %c0_3], %2 {strides = array<i32>} : memref<72x1088xf32, #tpu.memory_space<vmem>>, vector<8x1088xf32>,
    %4 = vector.extract_strided_slice %1 {offsets = [0, 1], sizes = [8, 1088], strides = [1, 1]} : vector<8x1190xf32> to vector<8x1088xf32>
    %c8 = arith.constant 8 : index
    %c0_4 = arith.constant 0 : index
    %5 = vector.load %arg5[%c8, %c0_4] : memref<72x1088xf32, #tpu.memory_space<vmem>>, vector<8x1088xf32>
    tpu.vector_store %arg5[%c8, %c0_4], %4 {strides = array<i32>} : memref<72x1088xf32, #tpu.memory_space<vmem>>, vector<8x1088xf32>,
    %6 = vector.extract_strided_slice %1 {offsets = [0, 2], sizes = [8, 1088], strides = [1, 1]} : vector<8x1190xf32> to vector<8x1088xf32>
    %c16 = arith.constant 16 : index
    %c0_5 = arith.constant 0 : index
    %7 = vector.load %arg5[%c16, %c0_5] : memref<72x1088xf32, #tpu.memory_space<vmem>>, vector<8x1088xf32>
    tpu.vector_store %arg5[%c16, %c0_5], %6 {strides = array<i32>} : memref<72x1088xf32, #tpu.memory_space<vmem>>, vector<8x1088xf32>,
    %8 = vector.extract_strided_slice %1 {offsets = [0, 34], sizes = [8, 1088], strides = [1, 1]} : vector<8x1190xf32> to vector<8x1088xf32>
    %c24 = arith.constant 24 : index
    %c0_6 = arith.constant 0 : index
    %9 = vector.load %arg5[%c24, %c0_6] : memref<72x1088xf32, #tpu.memory_space<vmem>>, vector<8x1088xf32>
    tpu.vector_store %arg5[%c24, %c0_6], %8 {strides = array<i32>} : memref<72x1088xf32, #tpu.memory_space<vmem>>, vector<8x1088xf32>,
    %10 = vector.extract_strided_slice %1 {offsets = [0, 35], sizes = [8, 1088], strides = [1, 1]} : vector<8x1190xf32> to vector<8x1088xf32>
    %c32 = arith.constant 32 : index
    %c0_7 = arith.constant 0 : index
    %11 = vector.load %arg5[%c32, %c0_7] : memref<72x1088xf32, #tpu.memory_space<vmem>>, vector<8x1088xf32>
    tpu.vector_store %arg5[%c32, %c0_7], %10 {strides = array<i32>} : memref<72x1088xf32, #tpu.memory_space<vmem>>, vector<8x1088xf32>,
    %12 = vector.extract_strided_slice %1 {offsets = [0, 36], sizes = [8, 1088], strides = [1, 1]} : vector<8x1190xf32> to vector<8x1088xf32>
    %c40 = arith.constant 40 : index
    %c0_8 = arith.constant 0 : index
    %13 = vector.load %arg5[%c40, %c0_8] : memref<72x1088xf32, #tpu.memory_space<vmem>>, vector<8x1088xf32>
    tpu.vector_store %arg5[%c40, %c0_8], %12 {strides = array<i32>} : memref<72x1088xf32, #tpu.memory_space<vmem>>, vector<8x1088xf32>,
    %14 = vector.extract_strided_slice %1 {offsets = [0, 68], sizes = [8, 1088], strides = [1, 1]} : vector<8x1190xf32> to vector<8x1088xf32>
    %c48 = arith.constant 48 : index
    %c0_9 = arith.constant 0 : index
    %15 = vector.load %arg5[%c48, %c0_9] : memref<72x1088xf32, #tpu.memory_space<vmem>>, vector<8x1088xf32>
    tpu.vector_store %arg5[%c48, %c0_9], %14 {strides = array<i32>} : memref<72x1088xf32, #tpu.memory_space<vmem>>, vector<8x1088xf32>,
    %16 = vector.extract_strided_slice %1 {offsets = [0, 69], sizes = [8, 1088], strides = [1, 1]} : vector<8x1190xf32> to vector<8x1088xf32>
    %c56 = arith.constant 56 : index
    %c0_10 = arith.constant 0 : index
    %17 = vector.load %arg5[%c56, %c0_10] : memref<72x1088xf32, #tpu.memory_space<vmem>>, vector<8x1088xf32>
    tpu.vector_store %arg5[%c56, %c0_10], %16 {strides = array<i32>} : memref<72x1088xf32, #tpu.memory_space<vmem>>, vector<8x1088xf32>,
    %18 = vector.extract_strided_slice %1 {offsets = [0, 70], sizes = [8, 1088], strides = [1, 1]} : vector<8x1190xf32> to vector<8x1088xf32>
    %c64 = arith.constant 64 : index
    %c0_11 = arith.constant 0 : index
    %19 = vector.load %arg5[%c64, %c0_11] : memref<72x1088xf32, #tpu.memory_space<vmem>>, vector<8x1088xf32>
    tpu.vector_store %arg5[%c64, %c0_11], %18 {strides = array<i32>} : memref<72x1088xf32, #tpu.memory_space<vmem>>, vector<8x1088xf32>,
    %c0_12 = arith.constant 0 : index
    %c0_13 = arith.constant 0 : index
    %20 = vector.load %arg2[%c0_12, %c0_13] : memref<8x72xf32, #tpu.memory_space<vmem>>, vector<8x72xf32>
    %c0_14 = arith.constant 0 : index
    %c0_15 = arith.constant 0 : index
    %21 = vector.load %arg5[%c0_14, %c0_15] : memref<72x1088xf32, #tpu.memory_space<vmem>>, vector<72x1088xf32>
    %cst = arith.constant dense<0.000000e+00> : vector<8x1088xf32>
    %22 = tpu.matmul %20, %21, %cst {dimension_numbers = #tpu.dot_dimension_numbers<[1], [0], [0], [1], [0, 0, 1, 1], [], []>} : vector<8x72xf32>, vector<72x1088xf32>, vector<8x1088xf32> -> vector<8x1088xf32>
    %c0_16 = arith.constant 0 : index
    %c0_17 = arith.constant 0 : index
    %23 = vector.load %arg3[%c0_16, %c0_17] : memref<8x1xf32, #tpu.memory_space<vmem>>, vector<8x1xf32>
    %24 = vector.broadcast %23 : vector<8x1xf32> to vector<8x1088xf32>
    %25 = arith.addf %22, %24 : vector<8x1088xf32>
    %cst_18 = arith.constant 0.000000e+00 : f32
    %cst_19 = arith.constant 5.000000e-01 : f32
    %26 = vector.broadcast %cst_18 : f32 to vector<8x1088xf32>
    %27 = arith.maximumf %26, %25 : vector<8x1088xf32>
    %28 = vector.broadcast %cst_19 : f32 to vector<8x1088xf32>
    %29 = arith.minimumf %28, %27 : vector<8x1088xf32>
    %c0_20 = arith.constant 0 : index
    %c0_21 = arith.constant 0 : index
    %c0_22 = arith.constant 0 : index
    %30 = vector.load %arg4[%c0_20, %c0_21, %c0_22] : memref<1x8x1088xf32, #tpu.memory_space<vmem>>, vector<1x8x1088xf32>
    %31 = vector.shape_cast %30 : vector<1x8x1088xf32> to vector<8x1088xf32>
    %32 = vector.shape_cast %29 : vector<8x1088xf32> to vector<1x8x1088xf32>
    tpu.vector_store %arg4[%c0_20, %c0_21, %c0_22], %32 {strides = array<i32>} : memref<1x8x1088xf32, #tpu.memory_space<vmem>>, vector<1x8x1088xf32>,
    return
  }
  func.func @transform_0(%arg0: i32) -> (i32, i32, i32) {
    %c0_i32 = arith.constant 0 : i32
    %c0_i32_0 = arith.constant 0 : i32
    %c0_i32_1 = arith.constant 0 : i32
    return %arg0, %c0_i32, %c0_i32_0 : i32, i32, i32
  }
  func.func @transform_1(%arg0: i32) -> (i32, i32) {
    %c0_i32 = arith.constant 0 : i32
    %c0_i32_0 = arith.constant 0 : i32
    %c0_i32_1 = arith.constant 0 : i32
    return %c0_i32, %c0_i32_0 : i32, i32
  }
  func.func @transform_2(%arg0: i32) -> (i32, i32) {
    %c0_i32 = arith.constant 0 : i32
    %c0_i32_0 = arith.constant 0 : i32
    %c0_i32_1 = arith.constant 0 : i32
    return %c0_i32, %c0_i32_0 : i32, i32
  }
  func.func @transform_3(%arg0: i32) -> (i32, i32, i32) {
    %c0_i32 = arith.constant 0 : i32
    %c0_i32_0 = arith.constant 0 : i32
    %c0_i32_1 = arith.constant 0 : i32
    return %arg0, %c0_i32, %c0_i32_0 : i32, i32, i32
  }
}

</mosaic_0001>

<llo_original>
// kernel: conv_transpose_fused.1
$region0: #{conv_transpose_fused.1}
  #allocation0 [shape = 'u32[]', space=smem, size = 0x4, offset = 0x4, fixed_abs, tag = 'smem constant byte address 0x4 - core index']
  #allocation1 [shape = 'u32[144,128]{1,0:T(1,128)}', space=vmem, size = 0x12000, scoped, tag = 'internal scratch']
  #allocation2 [shape = 'f32[72,1088]{1,0:T(8,128)}', space=vmem, size = 0x51000, scoped, tag = 'scratch operand']
  %s0 = inlined_call_operand.vmem [shape: f32[2,8,1190], index: 0, kind: input, shape index: {}]
  %s1 = inlined_call_operand.vmem [shape: f32[8,72], index: 1, kind: input, shape index: {}]
  %s2 = inlined_call_operand.vmem [shape: f32[8,1], index: 2, kind: input, shape index: {}]
  %s3 = inlined_call_operand.vmem [shape: f32[2,8,1088], index: 3, kind: output, shape index: {}]
  %s4 = sld [smem:[#allocation0]]
  $region45: #{conv_transpose_fused.1} parent=0
    _
  %s6 = ssub.s32 1, %s4
  %s7 = scalar_select 0, %s6, %s4
  loop: start=0, step=1, limit=4
  $region2: #{conv_transpose_fused.1} parent=0 // loop_pre_header
    _
  $region3: #{conv_transpose_fused.1} parent=0 // loop_header
    %s9 = sphi 0, %s13
    %p10 = scmp.ge.s32.totalorder %s9, 4
    %s19 = sphi 0, %s21
    %s22 = sphi 0, %s19
    %s23 = sphi 0, %s22
    %s39 = sphi 0, %s23
    %s43 = sphi 0, %s43
    %s45 = sphi 0, %s43
    %s46 = sphi 0, %s45
    %s60 = sphi 0, %s46
    %s64 = sphi 0, %s64
    %s66 = sphi 0, %s64
    %s67 = sphi 0, %s66
    %s81 = sphi 0, %s67
    %s87 = sphi 0, %s89
    %s90 = sphi 0, %s87
    %s91 = sphi 0, %s90
    %s107 = sphi 0, %s91
  $region4: #{conv_transpose_fused.1} parent=0 // loop_header_branch
    %12 = sbr.rel (%p10) target = $region8
  $region5: #{conv_transpose_fused.1} parent=0 // loop_body
    %s14 = ssub.s32 %s9, 1
    %s15 = ssub.s32 %s9, 2
    %s16 = sadd.s32 %s9, 1
    %s17 = ssub.s32 %s9, %s16
    %p18 = scmp.eq.s32.totalorder %s17, 0
    %s20 = sadd.s32 %s19, 1
    %s21 = scalar_select %p18, %s19, %s20
    %p24 = pneg %p18
    %p25 = scmp.eq.s32.totalorder %s9, 1
    %p26 = por %p24, %p25
    %p27 = scmp.ne.s32.totalorder %s19, %s22
    %p28 = scmp.eq.s32.totalorder %s9, 0
    %p29 = por %p27, %p28
    %p30 = scmp.ne.s32.totalorder %s19, %s22
    %p31 = scmp.eq.s32.totalorder %s14, 1
    %p32 = por %p30, %p31
    %p33 = scmp.ne.s32.totalorder %s22, %s23
    %p34 = scmp.eq.s32.totalorder %s14, 0
    %p35 = por %p33, %p34
    %p36 = scmp.ne.s32.totalorder %s22, %s23
    %p37 = scmp.eq.s32.totalorder %s15, 1
    %p38 = por %p36, %p37
    %p40 = scmp.ne.s32.totalorder %s23, %s39
    %p41 = scmp.eq.s32.totalorder %s15, 0
    %p42 = por %p40, %p41
    %s44 = sadd.s32 %s43, 1
    %p47 = scmp.eq.s32.totalorder %s9, 1
    %p48 = scmp.ne.s32.totalorder %s43, %s45
    %p49 = scmp.eq.s32.totalorder %s9, 0
    %p50 = por %p48, %p49
    %p51 = scmp.ne.s32.totalorder %s43, %s45
    %p52 = scmp.eq.s32.totalorder %s14, 1
    %p53 = por %p51, %p52
    %p54 = scmp.ne.s32.totalorder %s45, %s46
    %p55 = scmp.eq.s32.totalorder %s14, 0
    %p56 = por %p54, %p55
    %p57 = scmp.ne.s32.totalorder %s45, %s46
    %p58 = scmp.eq.s32.totalorder %s15, 1
    %p59 = por %p57, %p58
    %p61 = scmp.ne.s32.totalorder %s46, %s60
    %p62 = scmp.eq.s32.totalorder %s15, 0
    %p63 = por %p61, %p62
    %s65 = sadd.s32 %s64, 1
    %p68 = scmp.eq.s32.totalorder %s9, 1
    %p69 = scmp.ne.s32.totalorder %s64, %s66
    %p70 = scmp.eq.s32.totalorder %s9, 0
    %p71 = por %p69, %p70
    %p72 = scmp.ne.s32.totalorder %s64, %s66
    %p73 = scmp.eq.s32.totalorder %s14, 1
    %p74 = por %p72, %p73
    %p75 = scmp.ne.s32.totalorder %s66, %s67
    %p76 = scmp.eq.s32.totalorder %s14, 0
    %p77 = por %p75, %p76
    %p78 = scmp.ne.s32.totalorder %s66, %s67
    %p79 = scmp.eq.s32.totalorder %s15, 1
    %p80 = por %p78, %p79
    %p82 = scmp.ne.s32.totalorder %s67, %s81
    %p83 = scmp.eq.s32.totalorder %s15, 0
    %p84 = por %p82, %p83
    %s85 = ssub.s32 %s9, %s16
    %p86 = scmp.eq.s32.totalorder %s85, 0
    %s88 = sadd.s32 %s87, 1
    %s89 = scalar_select %p86, %s87, %s88
    %p92 = pneg %p86
    %p93 = scmp.eq.s32.totalorder %s9, 1
    %p94 = por %p92, %p93
    %p95 = scmp.ne.s32.totalorder %s87, %s90
    %p96 = scmp.eq.s32.totalorder %s9, 0
    %p97 = por %p95, %p96
    %p98 = scmp.ne.s32.totalorder %s87, %s90
    %p99 = scmp.eq.s32.totalorder %s14, 1
    %p100 = por %p98, %p99
    %p101 = scmp.ne.s32.totalorder %s90, %s91
    %p102 = scmp.eq.s32.totalorder %s14, 0
    %p103 = por %p101, %p102
    %p104 = scmp.ne.s32.totalorder %s90, %s91
    %p105 = scmp.eq.s32.totalorder %s15, 1
    %p106 = por %p104, %p105
    %p108 = scmp.ne.s32.totalorder %s91, %s107
    %p109 = scmp.eq.s32.totalorder %s15, 0
    %p110 = por %p108, %p109
    %p111 = scmp.le.s32.totalorder 1, %s9
    %p112 = scmp.lt.s32.totalorder %s9, 3
    %p113 = pnand %p111, %p112
    %p114 = pneg %p113
    // Predicated region
    $region9: #{conv_transpose_fused.1} parent=5 // pred_check
      _
    $region10: #{conv_transpose_fused.1} parent=5 // pred_check_branch
      %116 = sbr.rel (%p113) target = $region12
    $region11: #{conv_transpose_fused.1} parent=5 // pred_region
      %s117 = ssub.s32 %s9, 1
      // Predicated region
      $region13: #{conv_transpose_fused.1} parent=11 // pred_check
        %p118 = pneg %p56
      $region14: #{conv_transpose_fused.1} parent=11 // pred_check_branch
        %120 = sbr.rel (%p118) target = $region16
      $region15: #{conv_transpose_fused.1} parent=11 // pred_region
        _
      $region16: #{conv_transpose_fused.1} parent=11 // pred_fallthru
        _
      // Predicated region
      $region17: #{conv_transpose_fused.1} parent=11 // pred_check
        %p121 = pneg %p77
      $region18: #{conv_transpose_fused.1} parent=11 // pred_check_branch
        %123 = sbr.rel (%p121) target = $region20
      $region19: #{conv_transpose_fused.1} parent=11 // pred_region
        _
      $region20: #{conv_transpose_fused.1} parent=11 // pred_fallthru
        _
    $region12: #{conv_transpose_fused.1} parent=5 // pred_fallthru
      _
    %p124 = scmp.lt.s32.totalorder %s9, 2
    // Predicated region
    $region21: #{conv_transpose_fused.1} parent=5 // pred_check
      %p125 = pneg %p124
    $region22: #{conv_transpose_fused.1} parent=5 // pred_check_branch
      %127 = sbr.rel (%p125) target = $region24
    $region23: #{conv_transpose_fused.1} parent=5 // pred_region
      // Predicated region
      $region25: #{conv_transpose_fused.1} parent=23 // pred_check
        %p128 = pneg %p29
      $region26: #{conv_transpose_fused.1} parent=23 // pred_check_branch
        %130 = sbr.rel (%p128) target = $region28
      $region27: #{conv_transpose_fused.1} parent=23 // pred_region
        %p131 = scmp.lt.s32.totalorder %s9, 1
        %s132 = scalar_select %p131, %s9, 1
        %s133 = smul.addr %s132, 10
        %s134 = smul.addr %s133, 8
        %s135 = scalar_lea.vmem %s0, %s134
      $region28: #{conv_transpose_fused.1} parent=23 // pred_fallthru
        _
    $region24: #{conv_transpose_fused.1} parent=5 // pred_fallthru
      _
    %p136 = scmp.le.s32.totalorder 1, %s9
    %p137 = scmp.lt.s32.totalorder %s9, 3
    %p138 = pnand %p136, %p137
    %p139 = pneg %p138
    // Predicated region
    $region29: #{conv_transpose_fused.1} parent=5 // pred_check
      _
    $region30: #{conv_transpose_fused.1} parent=5 // pred_check_branch
      %141 = sbr.rel (%p138) target = $region32
    $region31: #{conv_transpose_fused.1} parent=5 // pred_region
      %s142 = ssub.s32 %s9, 1
      %p143 = scmp.lt.s32.totalorder %s14, 1
      %s144 = scalar_select %p143, %s14, 1
      %s145 = smul.addr %s144, 10
      %s146 = smul.addr %s145, 8
      %s147 = scalar_lea.vmem %s0, %s146
      %p148 = pneg %p35
      %p149 = pneg %p32
      %p150 = pneg %p56
      %p151 = pneg %p53
      %p152 = pneg %p77
      %p153 = pneg %p74
      %p154 = pneg %p103
      %p155 = pneg %p100
      %p156 = scmp.lt.s32.totalorder %s14, 1
      %s157 = scalar_select %p156, %s14, 1
      %s158 = smul.addr %s157, 9
      %s159 = smul.addr %s158, 8
      %s160 = scalar_lea.vmem %s3, %s159
      %p161 = scmp.lt.s32.totalorder %s14, 1
      %s162 = scalar_select %p161, %s14, 1
      %s163 = smul.addr %s162, 10
      %s164 = smul.addr %s163, 8
      %s165 = scalar_lea.vmem %s0, %s164
      %p166 = scmp.lt.s32.totalorder %s14, 1
      %s167 = scalar_select %p166, %s14, 1
      %s168 = smul.addr %s167, 9
      %s169 = smul.addr %s168, 8
      %s170 = scalar_lea.vmem %s3, %s169
      %v171 = vld [vmem:[%s165] sm:$0xff]
      %v172 = vld [vmem:[%s165 + $0x8] sm:$0xff]
      %v173 = vld [vmem:[%s165 + $0x10] sm:$0xff]
      %v174 = vld [vmem:[%s165 + $0x18] sm:$0xff]
      %v175 = vld [vmem:[%s165 + $0x20] sm:$0xff]
      %v176 = vld [vmem:[%s165 + $0x28] sm:$0xff]
      %v177 = vld [vmem:[%s165 + $0x30] sm:$0xff]
      %v178 = vld [vmem:[%s165 + $0x38] sm:$0xff]
      %v179 = vld [vmem:[%s165 + $0x40] sm:$0xff]
      %v180 = vld [vmem:[%s165 + $0x48] sm:$0xff]
      %181 = vst [vmem:[#allocation2] sm:$0xff] %v171
      %182 = vst [vmem:[#allocation2 + $0x8] sm:$0xff] %v172
      %183 = vst [vmem:[#allocation2 + $0x10] sm:$0xff] %v173
      %184 = vst [vmem:[#allocation2 + $0x18] sm:$0xff] %v174
      %185 = vst [vmem:[#allocation2 + $0x20] sm:$0xff] %v175
      %186 = vst [vmem:[#allocation2 + $0x28] sm:$0xff] %v176
      %187 = vst [vmem:[#allocation2 + $0x30] sm:$0xff] %v177
      %188 = vst [vmem:[#allocation2 + $0x38] sm:$0xff] %v178
      %vm189 = vcmask 523264
      %190 = vst.msk [vmem:[#allocation2 + $0x40] sm:$0xff] %vm189, %v179
      %200 = vrot.lane.b32.xlu0 %v171, 127
      %v201 = vpop.permute.xlu0 %200
      %202 = vrot.lane.b32.xlu0 %v172, 127
      %v203 = vpop.permute.xlu0 %202
      %204 = vrot.lane.b32.xlu0 %v173, 127
      %v205 = vpop.permute.xlu0 %204
      %206 = vrot.lane.b32.xlu0 %v174, 127
      %v207 = vpop.permute.xlu0 %206
      %208 = vrot.lane.b32.xlu0 %v175, 127
      %v209 = vpop.permute.xlu0 %208
      %210 = vrot.lane.b32.xlu0 %v176, 127
      %v211 = vpop.permute.xlu0 %210
      %212 = vrot.lane.b32.xlu0 %v177, 127
      %v213 = vpop.permute.xlu0 %212
      %214 = vrot.lane.b32.xlu0 %v178, 127
      %v215 = vpop.permute.xlu0 %214
      %216 = vrot.lane.b32.xlu0 %v179, 127
      %v217 = vpop.permute.xlu0 %216
      %vm218 = vcmask 1039360
      %v219 = vsel %vm218, %v201, %v203
      %v220 = vsel %vm218, %v203, %v205
      %v221 = vsel %vm218, %v205, %v207
      %v222 = vsel %vm218, %v207, %v209
      %v223 = vsel %vm218, %v209, %v211
      %v224 = vsel %vm218, %v211, %v213
      %v225 = vsel %vm218, %v213, %v215
      %v226 = vsel %vm218, %v215, %v217
      %236 = vst [vmem:[#allocation2 + $0x48] sm:$0xff] %v219
      %237 = vst [vmem:[#allocation2 + $0x50] sm:$0xff] %v220
      %238 = vst [vmem:[#allocation2 + $0x58] sm:$0xff] %v221
      %239 = vst [vmem:[#allocation2 + $0x60] sm:$0xff] %v222
      %240 = vst [vmem:[#allocation2 + $0x68] sm:$0xff] %v223
      %241 = vst [vmem:[#allocation2 + $0x70] sm:$0xff] %v224
      %242 = vst [vmem:[#allocation2 + $0x78] sm:$0xff] %v225
      %243 = vst [vmem:[#allocation2 + $0x80] sm:$0xff] %v226
      %244 = vst.msk [vmem:[#allocation2 + $0x88] sm:$0xff] %vm189, %v217
      %245 = vrot.lane.b32.xlu0 %v171, 126
      %v246 = vpop.permute.xlu0 %245
      %247 = vrot.lane.b32.xlu0 %v172, 126
      %v248 = vpop.permute.xlu0 %247
      %249 = vrot.lane.b32.xlu0 %v173, 126
      %v250 = vpop.permute.xlu0 %249
      %251 = vrot.lane.b32.xlu0 %v174, 126
      %v252 = vpop.permute.xlu0 %251
      %253 = vrot.lane.b32.xlu0 %v175, 126
      %v254 = vpop.permute.xlu0 %253
      %255 = vrot.lane.b32.xlu0 %v176, 126
      %v256 = vpop.permute.xlu0 %255
      %257 = vrot.lane.b32.xlu0 %v177, 126
      %v258 = vpop.permute.xlu0 %257
      %259 = vrot.lane.b32.xlu0 %v178, 126
      %v260 = vpop.permute.xlu0 %259
      %261 = vrot.lane.b32.xlu0 %v179, 126
      %v262 = vpop.permute.xlu0 %261
      %vm263 = vcmask 1031168
      %v264 = vsel %vm263, %v246, %v248
      %v265 = vsel %vm263, %v248, %v250
      %v266 = vsel %vm263, %v250, %v252
      %v267 = vsel %vm263, %v252, %v254
      %v268 = vsel %vm263, %v254, %v256
      %v269 = vsel %vm263, %v256, %v258
      %v270 = vsel %vm263, %v258, %v260
      %v271 = vsel %vm263, %v260, %v262
      %281 = vst [vmem:[#allocation2 + $0x90] sm:$0xff] %v264
      %282 = vst [vmem:[#allocation2 + $0x98] sm:$0xff] %v265
      %283 = vst [vmem:[#allocation2 + $0xa0] sm:$0xff] %v266
      %284 = vst [vmem:[#allocation2 + $0xa8] sm:$0xff] %v267
      %285 = vst [vmem:[#allocation2 + $0xb0] sm:$0xff] %v268
      %286 = vst [vmem:[#allocation2 + $0xb8] sm:$0xff] %v269
      %287 = vst [vmem:[#allocation2 + $0xc0] sm:$0xff] %v270
      %288 = vst [vmem:[#allocation2 + $0xc8] sm:$0xff] %v271
      %289 = vst.msk [vmem:[#allocation2 + $0xd0] sm:$0xff] %vm189, %v262
      %290 = vrot.lane.b32.xlu0 %v171, 94
      %v291 = vpop.permute.xlu0 %290
      %292 = vrot.lane.b32.xlu0 %v172, 94
      %v293 = vpop.permute.xlu0 %292
      %294 = vrot.lane.b32.xlu0 %v173, 94
      %v295 = vpop.permute.xlu0 %294
      %296 = vrot.lane.b32.xlu0 %v174, 94
      %v297 = vpop.permute.xlu0 %296
      %298 = vrot.lane.b32.xlu0 %v175, 94
      %v299 = vpop.permute.xlu0 %298
      %300 = vrot.lane.b32.xlu0 %v176, 94
      %v301 = vpop.permute.xlu0 %300
      %302 = vrot.lane.b32.xlu0 %v177, 94
      %v303 = vpop.permute.xlu0 %302
      %304 = vrot.lane.b32.xlu0 %v178, 94
      %v305 = vpop.permute.xlu0 %304
      %306 = vrot.lane.b32.xlu0 %v179, 94
      %v307 = vpop.permute.xlu0 %306
      %vm308 = vcmask 769024
      %v309 = vsel %vm308, %v291, %v293
      %v310 = vsel %vm308, %v293, %v295
      %v311 = vsel %vm308, %v295, %v297
      %v312 = vsel %vm308, %v297, %v299
      %v313 = vsel %vm308, %v299, %v301
      %v314 = vsel %vm308, %v301, %v303
      %v315 = vsel %vm308, %v303, %v305
      %v316 = vsel %vm308, %v305, %v307
      %326 = vst [vmem:[#allocation2 + $0xd8] sm:$0xff] %v309
      %327 = vst [vmem:[#allocation2 + $0xe0] sm:$0xff] %v310
      %328 = vst [vmem:[#allocation2 + $0xe8] sm:$0xff] %v311
      %329 = vst [vmem:[#allocation2 + $0xf0] sm:$0xff] %v312
      %330 = vst [vmem:[#allocation2 + $0xf8] sm:$0xff] %v313
      %331 = vst [vmem:[#allocation2 + $0x100] sm:$0xff] %v314
      %332 = vst [vmem:[#allocation2 + $0x108] sm:$0xff] %v315
      %333 = vst [vmem:[#allocation2 + $0x110] sm:$0xff] %v316
      %334 = vst.msk [vmem:[#allocation2 + $0x118] sm:$0xff] %vm189, %v307
      %335 = vrot.lane.b32.xlu0 %v171, 93
      %v336 = vpop.permute.xlu0 %335
      %337 = vrot.lane.b32.xlu0 %v172, 93
      %v338 = vpop.permute.xlu0 %337
      %339 = vrot.lane.b32.xlu0 %v173, 93
      %v340 = vpop.permute.xlu0 %339
      %341 = vrot.lane.b32.xlu0 %v174, 93
      %v342 = vpop.permute.xlu0 %341
      %343 = vrot.lane.b32.xlu0 %v175, 93
      %v344 = vpop.permute.xlu0 %343
      %345 = vrot.lane.b32.xlu0 %v176, 93
      %v346 = vpop.permute.xlu0 %345
      %347 = vrot.lane.b32.xlu0 %v177, 93
      %v348 = vpop.permute.xlu0 %347
      %349 = vrot.lane.b32.xlu0 %v178, 93
      %v350 = vpop.permute.xlu0 %349
      %351 = vrot.lane.b32.xlu0 %v179, 93
      %v352 = vpop.permute.xlu0 %351
      %vm353 = vcmask 760832
      %v354 = vsel %vm353, %v336, %v338
      %v355 = vsel %vm353, %v338, %v340
      %v356 = vsel %vm353, %v340, %v342
      %v357 = vsel %vm353, %v342, %v344
      %v358 = vsel %vm353, %v344, %v346
      %v359 = vsel %vm353, %v346, %v348
      %v360 = vsel %vm353, %v348, %v350
      %v361 = vsel %vm353, %v350, %v352
      %371 = vst [vmem:[#allocation2 + $0x120] sm:$0xff] %v354
      %372 = vst [vmem:[#allocation2 + $0x128] sm:$0xff] %v355
      %373 = vst [vmem:[#allocation2 + $0x130] sm:$0xff] %v356
      %374 = vst [vmem:[#allocation2 + $0x138] sm:$0xff] %v357
      %375 = vst [vmem:[#allocation2 + $0x140] sm:$0xff] %v358
      %376 = vst [vmem:[#allocation2 + $0x148] sm:$0xff] %v359
      %377 = vst [vmem:[#allocation2 + $0x150] sm:$0xff] %v360
      %378 = vst [vmem:[#allocation2 + $0x158] sm:$0xff] %v361
      %379 = vst.msk [vmem:[#allocation2 + $0x160] sm:$0xff] %vm189, %v352
      %380 = vrot.lane.b32.xlu0 %v171, 92
      %v381 = vpop.permute.xlu0 %380
      %382 = vrot.lane.b32.xlu0 %v172, 92
      %v383 = vpop.permute.xlu0 %382
      %384 = vrot.lane.b32.xlu0 %v173, 92
      %v385 = vpop.permute.xlu0 %384
      %386 = vrot.lane.b32.xlu0 %v174, 92
      %v387 = vpop.permute.xlu0 %386
      %388 = vrot.lane.b32.xlu0 %v175, 92
      %v389 = vpop.permute.xlu0 %388
      %390 = vrot.lane.b32.xlu0 %v176, 92
      %v391 = vpop.permute.xlu0 %390
      %392 = vrot.lane.b32.xlu0 %v177, 92
      %v393 = vpop.permute.xlu0 %392
      %394 = vrot.lane.b32.xlu0 %v178, 92
      %v395 = vpop.permute.xlu0 %394
      %396 = vrot.lane.b32.xlu0 %v179, 92
      %v397 = vpop.permute.xlu0 %396
      %vm398 = vcmask 752640
      %v399 = vsel %vm398, %v381, %v383
      %v400 = vsel %vm398, %v383, %v385
      %v401 = vsel %vm398, %v385, %v387
      %v402 = vsel %vm398, %v387, %v389
      %v403 = vsel %vm398, %v389, %v391
      %v404 = vsel %vm398, %v391, %v393
      %v405 = vsel %vm398, %v393, %v395
      %v406 = vsel %vm398, %v395, %v397
      %416 = vst [vmem:[#allocation2 + $0x168] sm:$0xff] %v399
      %417 = vst [vmem:[#allocation2 + $0x170] sm:$0xff] %v400
      %418 = vst [vmem:[#allocation2 + $0x178] sm:$0xff] %v401
      %419 = vst [vmem:[#allocation2 + $0x180] sm:$0xff] %v402
      %420 = vst [vmem:[#allocation2 + $0x188] sm:$0xff] %v403
      %421 = vst [vmem:[#allocation2 + $0x190] sm:$0xff] %v404
      %422 = vst [vmem:[#allocation2 + $0x198] sm:$0xff] %v405
      %423 = vst [vmem:[#allocation2 + $0x1a0] sm:$0xff] %v406
      %424 = vst.msk [vmem:[#allocation2 + $0x1a8] sm:$0xff] %vm189, %v397
      %426 = vrot.lane.b32.xlu0 %v171, 60
      %v427 = vpop.permute.xlu0 %426
      %428 = vrot.lane.b32.xlu0 %v172, 60
      %v429 = vpop.permute.xlu0 %428
      %430 = vrot.lane.b32.xlu0 %v173, 60
      %v431 = vpop.permute.xlu0 %430
      %432 = vrot.lane.b32.xlu0 %v174, 60
      %v433 = vpop.permute.xlu0 %432
      %434 = vrot.lane.b32.xlu0 %v175, 60
      %v435 = vpop.permute.xlu0 %434
      %436 = vrot.lane.b32.xlu0 %v176, 60
      %v437 = vpop.permute.xlu0 %436
      %438 = vrot.lane.b32.xlu0 %v177, 60
      %v439 = vpop.permute.xlu0 %438
      %440 = vrot.lane.b32.xlu0 %v178, 60
      %v441 = vpop.permute.xlu0 %440
      %442 = vrot.lane.b32.xlu0 %v179, 60
      %v443 = vpop.permute.xlu0 %442
      %444 = vrot.lane.b32.xlu0 %v180, 60
      %v445 = vpop.permute.xlu0 %444
      %vm446 = vcmask 490496
      %v447 = vsel %vm446, %v427, %v429
      %v448 = vsel %vm446, %v429, %v431
      %v449 = vsel %vm446, %v431, %v433
      %v450 = vsel %vm446, %v433, %v435
      %v451 = vsel %vm446, %v435, %v437
      %v452 = vsel %vm446, %v437, %v439
      %v453 = vsel %vm446, %v439, %v441
      %v454 = vsel %vm446, %v441, %v443
      %v455 = vsel %vm446, %v443, %v445
      %465 = vst [vmem:[#allocation2 + $0x1b0] sm:$0xff] %v447
      %466 = vst [vmem:[#allocation2 + $0x1b8] sm:$0xff] %v448
      %467 = vst [vmem:[#allocation2 + $0x1c0] sm:$0xff] %v449
      %468 = vst [vmem:[#allocation2 + $0x1c8] sm:$0xff] %v450
      %469 = vst [vmem:[#allocation2 + $0x1d0] sm:$0xff] %v451
      %470 = vst [vmem:[#allocation2 + $0x1d8] sm:$0xff] %v452
      %471 = vst [vmem:[#allocation2 + $0x1e0] sm:$0xff] %v453
      %472 = vst [vmem:[#allocation2 + $0x1e8] sm:$0xff] %v454
      %473 = vst.msk [vmem:[#allocation2 + $0x1f0] sm:$0xff] %vm189, %v455
      %474 = vrot.lane.b32.xlu0 %v171, 59
      %v475 = vpop.permute.xlu0 %474
      %476 = vrot.lane.b32.xlu0 %v172, 59
      %v477 = vpop.permute.xlu0 %476
      %478 = vrot.lane.b32.xlu0 %v173, 59
      %v479 = vpop.permute.xlu0 %478
      %480 = vrot.lane.b32.xlu0 %v174, 59
      %v481 = vpop.permute.xlu0 %480
      %482 = vrot.lane.b32.xlu0 %v175, 59
      %v483 = vpop.permute.xlu0 %482
      %484 = vrot.lane.b32.xlu0 %v176, 59
      %v485 = vpop.permute.xlu0 %484
      %486 = vrot.lane.b32.xlu0 %v177, 59
      %v487 = vpop.permute.xlu0 %486
      %488 = vrot.lane.b32.xlu0 %v178, 59
      %v489 = vpop.permute.xlu0 %488
      %490 = vrot.lane.b32.xlu0 %v179, 59
      %v491 = vpop.permute.xlu0 %490
      %492 = vrot.lane.b32.xlu0 %v180, 59
      %v493 = vpop.permute.xlu0 %492
      %vm494 = vcmask 482304
      %v495 = vsel %vm494, %v475, %v477
      %v496 = vsel %vm494, %v477, %v479
      %v497 = vsel %vm494, %v479, %v481
      %v498 = vsel %vm494, %v481, %v483
      %v499 = vsel %vm494, %v483, %v485
      %v500 = vsel %vm494, %v485, %v487
      %v501 = vsel %vm494, %v487, %v489
      %v502 = vsel %vm494, %v489, %v491
      %v503 = vsel %vm494, %v491, %v493
      %513 = vst [vmem:[#allocation2 + $0x1f8] sm:$0xff] %v495
      %514 = vst [vmem:[#allocation2 + $0x200] sm:$0xff] %v496
      %515 = vst [vmem:[#allocation2 + $0x208] sm:$0xff] %v497
      %516 = vst [vmem:[#allocation2 + $0x210] sm:$0xff] %v498
      %517 = vst [vmem:[#allocation2 + $0x218] sm:$0xff] %v499
      %518 = vst [vmem:[#allocation2 + $0x220] sm:$0xff] %v500
      %519 = vst [vmem:[#allocation2 + $0x228] sm:$0xff] %v501
      %520 = vst [vmem:[#allocation2 + $0x230] sm:$0xff] %v502
      %521 = vst.msk [vmem:[#allocation2 + $0x238] sm:$0xff] %vm189, %v503
      %522 = vrot.lane.b32.xlu0 %v171, 58
      %v523 = vpop.permute.xlu0 %522
      %524 = vrot.lane.b32.xlu0 %v172, 58
      %v525 = vpop.permute.xlu0 %524
      %526 = vrot.lane.b32.xlu0 %v173, 58
      %v527 = vpop.permute.xlu0 %526
      %528 = vrot.lane.b32.xlu0 %v174, 58
      %v529 = vpop.permute.xlu0 %528
      %530 = vrot.lane.b32.xlu0 %v175, 58
      %v531 = vpop.permute.xlu0 %530
      %532 = vrot.lane.b32.xlu0 %v176, 58
      %v533 = vpop.permute.xlu0 %532
      %534 = vrot.lane.b32.xlu0 %v177, 58
      %v535 = vpop.permute.xlu0 %534
      %536 = vrot.lane.b32.xlu0 %v178, 58
      %v537 = vpop.permute.xlu0 %536
      %538 = vrot.lane.b32.xlu0 %v179, 58
      %v539 = vpop.permute.xlu0 %538
      %540 = vrot.lane.b32.xlu0 %v180, 58
      %v541 = vpop.permute.xlu0 %540
      %vm542 = vcmask 474112
      %v543 = vsel %vm542, %v523, %v525
      %v544 = vsel %vm542, %v525, %v527
      %v545 = vsel %vm542, %v527, %v529
      %v546 = vsel %vm542, %v529, %v531
      %v547 = vsel %vm542, %v531, %v533
      %v548 = vsel %vm542, %v533, %v535
      %v549 = vsel %vm542, %v535, %v537
      %v550 = vsel %vm542, %v537, %v539
      %v551 = vsel %vm542, %v539, %v541
      %561 = vst [vmem:[#allocation2 + $0x240] sm:$0xff] %v543
      %562 = vst [vmem:[#allocation2 + $0x248] sm:$0xff] %v544
      %563 = vst [vmem:[#allocation2 + $0x250] sm:$0xff] %v545
      %564 = vst [vmem:[#allocation2 + $0x258] sm:$0xff] %v546
      %565 = vst [vmem:[#allocation2 + $0x260] sm:$0xff] %v547
      %566 = vst [vmem:[#allocation2 + $0x268] sm:$0xff] %v548
      %567 = vst [vmem:[#allocation2 + $0x270] sm:$0xff] %v549
      %568 = vst [vmem:[#allocation2 + $0x278] sm:$0xff] %v550
      %569 = vst.msk [vmem:[#allocation2 + $0x280] sm:$0xff] %vm189, %v551
      %v570 = vld [vmem:[%s1] sm:$0xff]
      %v571 = vld [vmem:[#allocation2] sm:$0xff]
      %v572 = vld [vmem:[#allocation2 + $0x8] sm:$0xff]
      %v573 = vld [vmem:[#allocation2 + $0x10] sm:$0xff]
      %v574 = vld [vmem:[#allocation2 + $0x18] sm:$0xff]
      %v575 = vld [vmem:[#allocation2 + $0x20] sm:$0xff]
      %v576 = vld [vmem:[#allocation2 + $0x28] sm:$0xff]
      %v577 = vld [vmem:[#allocation2 + $0x30] sm:$0xff]
      %v578 = vld [vmem:[#allocation2 + $0x38] sm:$0xff]
      %v579 = vld [vmem:[#allocation2 + $0x40] sm:$0xff]
      %v580 = vld [vmem:[#allocation2 + $0x48] sm:$0xff]
      %v581 = vld [vmem:[#allocation2 + $0x50] sm:$0xff]
      %v582 = vld [vmem:[#allocation2 + $0x58] sm:$0xff]
      %v583 = vld [vmem:[#allocation2 + $0x60] sm:$0xff]
      %v584 = vld [vmem:[#allocation2 + $0x68] sm:$0xff]
      %v585 = vld [vmem:[#allocation2 + $0x70] sm:$0xff]
      %v586 = vld [vmem:[#allocation2 + $0x78] sm:$0xff]
      %v587 = vld [vmem:[#allocation2 + $0x80] sm:$0xff]
      %v588 = vld [vmem:[#allocation2 + $0x88] sm:$0xff]
      %v589 = vld [vmem:[#allocation2 + $0x90] sm:$0xff]
      %v590 = vld [vmem:[#allocation2 + $0x98] sm:$0xff]
      %v591 = vld [vmem:[#allocation2 + $0xa0] sm:$0xff]
      %v592 = vld [vmem:[#allocation2 + $0xa8] sm:$0xff]
      %v593 = vld [vmem:[#allocation2 + $0xb0] sm:$0xff]
      %v594 = vld [vmem:[#allocation2 + $0xb8] sm:$0xff]
      %v595 = vld [vmem:[#allocation2 + $0xc0] sm:$0xff]
      %v596 = vld [vmem:[#allocation2 + $0xc8] sm:$0xff]
      %v597 = vld [vmem:[#allocation2 + $0xd0] sm:$0xff]
      %v598 = vld [vmem:[#allocation2 + $0xd8] sm:$0xff]
      %v599 = vld [vmem:[#allocation2 + $0xe0] sm:$0xff]
      %v600 = vld [vmem:[#allocation2 + $0xe8] sm:$0xff]
      %v601 = vld [vmem:[#allocation2 + $0xf0] sm:$0xff]
      %v602 = vld [vmem:[#allocation2 + $0xf8] sm:$0xff]
      %v603 = vld [vmem:[#allocation2 + $0x100] sm:$0xff]
      %v604 = vld [vmem:[#allocation2 + $0x108] sm:$0xff]
      %v605 = vld [vmem:[#allocation2 + $0x110] sm:$0xff]
      %v606 = vld [vmem:[#allocation2 + $0x118] sm:$0xff]
      %v607 = vld [vmem:[#allocation2 + $0x120] sm:$0xff]
      %v608 = vld [vmem:[#allocation2 + $0x128] sm:$0xff]
      %v609 = vld [vmem:[#allocation2 + $0x130] sm:$0xff]
      %v610 = vld [vmem:[#allocation2 + $0x138] sm:$0xff]
      %v611 = vld [vmem:[#allocation2 + $0x140] sm:$0xff]
      %v612 = vld [vmem:[#allocation2 + $0x148] sm:$0xff]
      %v613 = vld [vmem:[#allocation2 + $0x150] sm:$0xff]
      %v614 = vld [vmem:[#allocation2 + $0x158] sm:$0xff]
      %v615 = vld [vmem:[#allocation2 + $0x160] sm:$0xff]
      %v616 = vld [vmem:[#allocation2 + $0x168] sm:$0xff]
      %v617 = vld [vmem:[#allocation2 + $0x170] sm:$0xff]
      %v618 = vld [vmem:[#allocation2 + $0x178] sm:$0xff]
      %v619 = vld [vmem:[#allocation2 + $0x180] sm:$0xff]
      %v620 = vld [vmem:[#allocation2 + $0x188] sm:$0xff]
      %v621 = vld [vmem:[#allocation2 + $0x190] sm:$0xff]
      %v622 = vld [vmem:[#allocation2 + $0x198] sm:$0xff]
      %v623 = vld [vmem:[#allocation2 + $0x1a0] sm:$0xff]
      %v624 = vld [vmem:[#allocation2 + $0x1a8] sm:$0xff]
      %v625 = vld [vmem:[#allocation2 + $0x1b0] sm:$0xff]
      %v626 = vld [vmem:[#allocation2 + $0x1b8] sm:$0xff]
      %v627 = vld [vmem:[#allocation2 + $0x1c0] sm:$0xff]
      %v628 = vld [vmem:[#allocation2 + $0x1c8] sm:$0xff]
      %v629 = vld [vmem:[#allocation2 + $0x1d0] sm:$0xff]
      %v630 = vld [vmem:[#allocation2 + $0x1d8] sm:$0xff]
      %v631 = vld [vmem:[#allocation2 + $0x1e0] sm:$0xff]
      %v632 = vld [vmem:[#allocation2 + $0x1e8] sm:$0xff]
      %v633 = vld [vmem:[#allocation2 + $0x1f0] sm:$0xff]
      %v634 = vld [vmem:[#allocation2 + $0x1f8] sm:$0xff]
      %v635 = vld [vmem:[#allocation2 + $0x200] sm:$0xff]
      %v636 = vld [vmem:[#allocation2 + $0x208] sm:$0xff]
      %v637 = vld [vmem:[#allocation2 + $0x210] sm:$0xff]
      %v638 = vld [vmem:[#allocation2 + $0x218] sm:$0xff]
      %v639 = vld [vmem:[#allocation2 + $0x220] sm:$0xff]
      %v640 = vld [vmem:[#allocation2 + $0x228] sm:$0xff]
      %v641 = vld [vmem:[#allocation2 + $0x230] sm:$0xff]
      %v642 = vld [vmem:[#allocation2 + $0x238] sm:$0xff]
      %v643 = vld [vmem:[#allocation2 + $0x240] sm:$0xff]
      %v644 = vld [vmem:[#allocation2 + $0x248] sm:$0xff]
      %v645 = vld [vmem:[#allocation2 + $0x250] sm:$0xff]
      %v646 = vld [vmem:[#allocation2 + $0x258] sm:$0xff]
      %v647 = vld [vmem:[#allocation2 + $0x260] sm:$0xff]
      %v648 = vld [vmem:[#allocation2 + $0x268] sm:$0xff]
      %v649 = vld [vmem:[#allocation2 + $0x270] sm:$0xff]
      %v650 = vld [vmem:[#allocation2 + $0x278] sm:$0xff]
      %v651 = vld [vmem:[#allocation2 + $0x280] sm:$0xff]
      %v652 = vld [vmem:[%s2] sm:$0xff]
      %654 = vset.pattern.permute.xlu0 0
      %655 = vperm.xlu0 %654, %v652
      %v656 = vpop.permute.xlu0 %655
      %vm658 = vcmask 588800
      %v660 = vsel %vm658, %v570, 0
      %662 = vmatprep.subr.mxu0 %v572
      %663 = vmatpush1.msra.mxu0 %v571
      %664 = vmatprep.subr.mxu0 %v581
      %665 = vmatpush1.msra.mxu0 %v580
      %666 = vmatprep.subr.mxu0 %v590
      %667 = vmatpush1.msra.mxu0 %v589
      %668 = vmatprep.subr.mxu0 %v599
      %669 = vmatpush1.msra.mxu0 %v598
      %670 = vmatprep.subr.mxu0 %v608
      %671 = vmatpush1.msra.mxu0 %v607
      %672 = vmatprep.subr.mxu0 %v617
      %673 = vmatpush1.msra.mxu0 %v616
      %674 = vmatprep.subr.mxu0 %v626
      %675 = vmatpush1.msra.mxu0 %v625
      %676 = vmatprep.subr.mxu0 %v635
      %677 = vmatpush1.msra.mxu0 %v634
      %678 = vmatprep.subr.mxu0 %v644
      %679 = vmatpush1.msra.mxu0 %v643
      %680 = vmatprep.subr.mxu0 0.0
      %681 = vmatpush1.msra.mxu0 0.0
      %682 = vmatprep.subr.mxu0 0.0
      %683 = vmatpush1.msra.mxu0 0.0
      %684 = vmatprep.subr.mxu0 0.0
      %685 = vmatpush1.msra.mxu0 0.0
      %686 = vmatprep.subr.mxu0 0.0
      %687 = vmatpush1.msra.mxu0 0.0
      %688 = vmatprep.subr.mxu0 0.0
      %689 = vmatpush1.msra.mxu0 0.0
      %690 = vmatprep.subr.mxu0 0.0
      %691 = vmatpush1.msra.mxu0 0.0
      %692 = vmatprep.subr.mxu0 0.0
      %693 = vmatpush1.msra.mxu0 0.0
      %694 = vmatprep.subr.mxu0 0.0
      %695 = vmatpush1.msra.mxu0 0.0
      %696 = vmatprep.subr.mxu0 0.0
      %697 = vmatpush1.msra.mxu0 0.0
      %698 = vmatprep.subr.mxu0 0.0
      %699 = vmatpush1.msra.mxu0 0.0
      %700 = vmatprep.subr.mxu0 0.0
      %701 = vmatpush1.msra.mxu0 0.0
      %702 = vmatprep.subr.mxu0 0.0
      %703 = vmatpush1.msra.mxu0 0.0
      %704 = vmatprep.subr.mxu0 0.0
      %705 = vmatpush1.msra.mxu0 0.0
      %706 = vmatprep.subr.mxu0 0.0
      %707 = vmatpush1.msra.mxu0 0.0
      %708 = vmatprep.subr.mxu0 0.0
      %709 = vmatpush1.msra.mxu0 0.0
      %710 = vmatprep.subr.mxu0 0.0
      %711 = vmatpush1.msra.mxu0 0.0
      %712 = vmatprep.subr.mxu0 0.0
      %713 = vmatpush1.msra.mxu0 0.0
      %714 = vmatprep.subr.mxu0 0.0
      %715 = vmatpush1.msra.mxu0 0.0
      %716 = vmatprep.subr.mxu0 0.0
      %717 = vmatpush1.msra.mxu0 0.0
      %718 = vmatprep.subr.mxu0 0.0
      %719 = vmatpush1.msra.mxu0 0.0
      %720 = vmatprep.subr.mxu0 0.0
      %721 = vmatpush1.msra.mxu0 0.0
      %722 = vmatprep.subr.mxu0 0.0
      %723 = vmatpush1.msra.mxu0 0.0
      %724 = vmatprep.subr.mxu0 0.0
      %725 = vmatpush1.msra.mxu0 0.0
      %726 = vmatprep.mubr.f32.mxu0 0.0
      %727 = vmatmul.mubr.f32.gmra.mrb[0].mxu0 %v660
      %v728 = vpop.f32.mrb[0].mxu0
      %v729 = vadd.f32 %v656, %v728
      %v730 = vpop.f32.mrb[0].mxu0
      %v731 = vadd.f32 %v656, %v730
      %732 = vdwg.mxu0
      %733 = vmatprep.subr.mxu0 %v574
      %734 = vmatpush1.msra.mxu0 %v573
      %735 = vmatprep.subr.mxu0 %v583
      %736 = vmatpush1.msra.mxu0 %v582
      %737 = vmatprep.subr.mxu0 %v592
      %738 = vmatpush1.msra.mxu0 %v591
      %739 = vmatprep.subr.mxu0 %v601
      %740 = vmatpush1.msra.mxu0 %v600
      %741 = vmatprep.subr.mxu0 %v610
      %742 = vmatpush1.msra.mxu0 %v609
      %743 = vmatprep.subr.mxu0 %v619
      %744 = vmatpush1.msra.mxu0 %v618
      %745 = vmatprep.subr.mxu0 %v628
      %746 = vmatpush1.msra.mxu0 %v627
      %747 = vmatprep.subr.mxu0 %v637
      %748 = vmatpush1.msra.mxu0 %v636
      %749 = vmatprep.subr.mxu0 %v646
      %750 = vmatpush1.msra.mxu0 %v645
      %751 = vmatprep.subr.mxu0 0.0
      %752 = vmatpush1.msra.mxu0 0.0
      %753 = vmatprep.subr.mxu0 0.0
      %754 = vmatpush1.msra.mxu0 0.0
      %755 = vmatprep.subr.mxu0 0.0
      %756 = vmatpush1.msra.mxu0 0.0
      %757 = vmatprep.subr.mxu0 0.0
      %758 = vmatpush1.msra.mxu0 0.0
      %759 = vmatprep.subr.mxu0 0.0
      %760 = vmatpush1.msra.mxu0 0.0
      %761 = vmatprep.subr.mxu0 0.0
      %762 = vmatpush1.msra.mxu0 0.0
      %763 = vmatprep.subr.mxu0 0.0
      %764 = vmatpush1.msra.mxu0 0.0
      %765 = vmatprep.subr.mxu0 0.0
      %766 = vmatpush1.msra.mxu0 0.0
      %767 = vmatprep.subr.mxu0 0.0
      %768 = vmatpush1.msra.mxu0 0.0
      %769 = vmatprep.subr.mxu0 0.0
      %770 = vmatpush1.msra.mxu0 0.0
      %771 = vmatprep.subr.mxu0 0.0
      %772 = vmatpush1.msra.mxu0 0.0
      %773 = vmatprep.subr.mxu0 0.0
      %774 = vmatpush1.msra.mxu0 0.0
      %775 = vmatprep.subr.mxu0 0.0
      %776 = vmatpush1.msra.mxu0 0.0
      %777 = vmatprep.subr.mxu0 0.0
      %778 = vmatpush1.msra.mxu0 0.0
      %779 = vmatprep.subr.mxu0 0.0
      %780 = vmatpush1.msra.mxu0 0.0
      %781 = vmatprep.subr.mxu0 0.0
      %782 = vmatpush1.msra.mxu0 0.0
      %783 = vmatprep.subr.mxu0 0.0
      %784 = vmatpush1.msra.mxu0 0.0
      %785 = vmatprep.subr.mxu0 0.0
      %786 = vmatpush1.msra.mxu0 0.0
      %787 = vmatprep.subr.mxu0 0.0
      %788 = vmatpush1.msra.mxu0 0.0
      %789 = vmatprep.subr.mxu0 0.0
      %790 = vmatpush1.msra.mxu0 0.0
      %791 = vmatprep.subr.mxu0 0.0
      %792 = vmatpush1.msra.mxu0 0.0
      %793 = vmatprep.subr.mxu0 0.0
      %794 = vmatpush1.msra.mxu0 0.0
      %795 = vmatprep.subr.mxu0 0.0
      %796 = vmatpush1.msra.mxu0 0.0
      %797 = vmatprep.mubr.f32.mxu0 0.0
      %798 = vmatmul.mubr.f32.gmra.mrb[0].mxu0 %v660
      %v799 = vpop.f32.mrb[0].mxu0
      %v800 = vadd.f32 %v656, %v799
      %v801 = vpop.f32.mrb[0].mxu0
      %v802 = vadd.f32 %v656, %v801
      %803 = vdwg.mxu0
      %804 = vmatprep.subr.mxu0 %v576
      %805 = vmatpush1.msra.mxu0 %v575
      %806 = vmatprep.subr.mxu0 %v585
      %807 = vmatpush1.msra.mxu0 %v584
      %808 = vmatprep.subr.mxu0 %v594
      %809 = vmatpush1.msra.mxu0 %v593
      %810 = vmatprep.subr.mxu0 %v603
      %811 = vmatpush1.msra.mxu0 %v602
      %812 = vmatprep.subr.mxu0 %v612
      %813 = vmatpush1.msra.mxu0 %v611
      %814 = vmatprep.subr.mxu0 %v621
      %815 = vmatpush1.msra.mxu0 %v620
      %816 = vmatprep.subr.mxu0 %v630
      %817 = vmatpush1.msra.mxu0 %v629
      %818 = vmatprep.subr.mxu0 %v639
      %819 = vmatpush1.msra.mxu0 %v638
      %820 = vmatprep.subr.mxu0 %v648
      %821 = vmatpush1.msra.mxu0 %v647
      %822 = vmatprep.subr.mxu0 0.0
      %823 = vmatpush1.msra.mxu0 0.0
      %824 = vmatprep.subr.mxu0 0.0
      %825 = vmatpush1.msra.mxu0 0.0
      %826 = vmatprep.subr.mxu0 0.0
      %827 = vmatpush1.msra.mxu0 0.0
      %828 = vmatprep.subr.mxu0 0.0
      %829 = vmatpush1.msra.mxu0 0.0
      %830 = vmatprep.subr.mxu0 0.0
      %831 = vmatpush1.msra.mxu0 0.0
      %832 = vmatprep.subr.mxu0 0.0
      %833 = vmatpush1.msra.mxu0 0.0
      %834 = vmatprep.subr.mxu0 0.0
      %835 = vmatpush1.msra.mxu0 0.0
      %836 = vmatprep.subr.mxu0 0.0
      %837 = vmatpush1.msra.mxu0 0.0
      %838 = vmatprep.subr.mxu0 0.0
      %839 = vmatpush1.msra.mxu0 0.0
      %840 = vmatprep.subr.mxu0 0.0
      %841 = vmatpush1.msra.mxu0 0.0
      %842 = vmatprep.subr.mxu0 0.0
      %843 = vmatpush1.msra.mxu0 0.0
      %844 = vmatprep.subr.mxu0 0.0
      %845 = vmatpush1.msra.mxu0 0.0
      %846 = vmatprep.subr.mxu0 0.0
      %847 = vmatpush1.msra.mxu0 0.0
      %848 = vmatprep.subr.mxu0 0.0
      %849 = vmatpush1.msra.mxu0 0.0
      %850 = vmatprep.subr.mxu0 0.0
      %851 = vmatpush1.msra.mxu0 0.0
      %852 = vmatprep.subr.mxu0 0.0
      %853 = vmatpush1.msra.mxu0 0.0
      %854 = vmatprep.subr.mxu0 0.0
      %855 = vmatpush1.msra.mxu0 0.0
      %856 = vmatprep.subr.mxu0 0.0
      %857 = vmatpush1.msra.mxu0 0.0
      %858 = vmatprep.subr.mxu0 0.0
      %859 = vmatpush1.msra.mxu0 0.0
      %860 = vmatprep.subr.mxu0 0.0
      %861 = vmatpush1.msra.mxu0 0.0
      %862 = vmatprep.subr.mxu0 0.0
      %863 = vmatpush1.msra.mxu0 0.0
      %864 = vmatprep.subr.mxu0 0.0
      %865 = vmatpush1.msra.mxu0 0.0
      %866 = vmatprep.subr.mxu0 0.0
      %867 = vmatpush1.msra.mxu0 0.0
      %868 = vmatprep.mubr.f32.mxu0 0.0
      %869 = vmatmul.mubr.f32.gmra.mrb[0].mxu0 %v660
      %v870 = vpop.f32.mrb[0].mxu0
      %v871 = vadd.f32 %v656, %v870
      %v872 = vpop.f32.mrb[0].mxu0
      %v873 = vadd.f32 %v656, %v872
      %874 = vdwg.mxu0
      %875 = vmatprep.subr.mxu0 %v578
      %876 = vmatpush1.msra.mxu0 %v577
      %877 = vmatprep.subr.mxu0 %v587
      %878 = vmatpush1.msra.mxu0 %v586
      %879 = vmatprep.subr.mxu0 %v596
      %880 = vmatpush1.msra.mxu0 %v595
      %881 = vmatprep.subr.mxu0 %v605
      %882 = vmatpush1.msra.mxu0 %v604
      %883 = vmatprep.subr.mxu0 %v614
      %884 = vmatpush1.msra.mxu0 %v613
      %885 = vmatprep.subr.mxu0 %v623
      %886 = vmatpush1.msra.mxu0 %v622
      %887 = vmatprep.subr.mxu0 %v632
      %888 = vmatpush1.msra.mxu0 %v631
      %889 = vmatprep.subr.mxu0 %v641
      %890 = vmatpush1.msra.mxu0 %v640
      %891 = vmatprep.subr.mxu0 %v650
      %892 = vmatpush1.msra.mxu0 %v649
      %893 = vmatprep.subr.mxu0 0.0
      %894 = vmatpush1.msra.mxu0 0.0
      %895 = vmatprep.subr.mxu0 0.0
      %896 = vmatpush1.msra.mxu0 0.0
      %897 = vmatprep.subr.mxu0 0.0
      %898 = vmatpush1.msra.mxu0 0.0
      %899 = vmatprep.subr.mxu0 0.0
      %900 = vmatpush1.msra.mxu0 0.0
      %901 = vmatprep.subr.mxu0 0.0
      %902 = vmatpush1.msra.mxu0 0.0
      %903 = vmatprep.subr.mxu0 0.0
      %904 = vmatpush1.msra.mxu0 0.0
      %905 = vmatprep.subr.mxu0 0.0
      %906 = vmatpush1.msra.mxu0 0.0
      %907 = vmatprep.subr.mxu0 0.0
      %908 = vmatpush1.msra.mxu0 0.0
      %909 = vmatprep.subr.mxu0 0.0
      %910 = vmatpush1.msra.mxu0 0.0
      %911 = vmatprep.subr.mxu0 0.0
      %912 = vmatpush1.msra.mxu0 0.0
      %913 = vmatprep.subr.mxu0 0.0
      %914 = vmatpush1.msra.mxu0 0.0
      %915 = vmatprep.subr.mxu0 0.0
      %916 = vmatpush1.msra.mxu0 0.0
      %917 = vmatprep.subr.mxu0 0.0
      %918 = vmatpush1.msra.mxu0 0.0
      %919 = vmatprep.subr.mxu0 0.0
      %920 = vmatpush1.msra.mxu0 0.0
      %921 = vmatprep.subr.mxu0 0.0
      %922 = vmatpush1.msra.mxu0 0.0
      %923 = vmatprep.subr.mxu0 0.0
      %924 = vmatpush1.msra.mxu0 0.0
      %925 = vmatprep.subr.mxu0 0.0
      %926 = vmatpush1.msra.mxu0 0.0
      %927 = vmatprep.subr.mxu0 0.0
      %928 = vmatpush1.msra.mxu0 0.0
      %929 = vmatprep.subr.mxu0 0.0
      %930 = vmatpush1.msra.mxu0 0.0
      %931 = vmatprep.subr.mxu0 0.0
      %932 = vmatpush1.msra.mxu0 0.0
      %933 = vmatprep.subr.mxu0 0.0
      %934 = vmatpush1.msra.mxu0 0.0
      %935 = vmatprep.subr.mxu0 0.0
      %936 = vmatpush1.msra.mxu0 0.0
      %937 = vmatprep.subr.mxu0 0.0
      %938 = vmatpush1.msra.mxu0 0.0
      %939 = vmatprep.mubr.f32.mxu0 0.0
      %940 = vmatmul.mubr.f32.gmra.mrb[0].mxu0 %v660
      %v941 = vpop.f32.mrb[0].mxu0
      %v942 = vadd.f32 %v656, %v941
      %v943 = vpop.f32.mrb[0].mxu0
      %v944 = vadd.f32 %v656, %v943
      %945 = vdwg.mxu0
      %946 = vmatprep.subr.mxu0 0.0
      %947 = vmatpush1.msra.mxu0 %v579
      %948 = vmatprep.subr.mxu0 0.0
      %949 = vmatpush1.msra.mxu0 %v588
      %950 = vmatprep.subr.mxu0 0.0
      %951 = vmatpush1.msra.mxu0 %v597
      %952 = vmatprep.subr.mxu0 0.0
      %953 = vmatpush1.msra.mxu0 %v606
      %954 = vmatprep.subr.mxu0 0.0
      %955 = vmatpush1.msra.mxu0 %v615
      %956 = vmatprep.subr.mxu0 0.0
      %957 = vmatpush1.msra.mxu0 %v624
      %958 = vmatprep.subr.mxu0 0.0
      %959 = vmatpush1.msra.mxu0 %v633
      %960 = vmatprep.subr.mxu0 0.0
      %961 = vmatpush1.msra.mxu0 %v642
      %962 = vmatprep.subr.mxu0 0.0
      %963 = vmatpush1.msra.mxu0 %v651
      %964 = vmatprep.subr.mxu0 0.0
      %965 = vmatpush1.msra.mxu0 0.0
      %966 = vmatprep.subr.mxu0 0.0
      %967 = vmatpush1.msra.mxu0 0.0
      %968 = vmatprep.subr.mxu0 0.0
      %969 = vmatpush1.msra.mxu0 0.0
      %970 = vmatprep.subr.mxu0 0.0
      %971 = vmatpush1.msra.mxu0 0.0
      %972 = vmatprep.subr.mxu0 0.0
      %973 = vmatpush1.msra.mxu0 0.0
      %974 = vmatprep.subr.mxu0 0.0
      %975 = vmatpush1.msra.mxu0 0.0
      %976 = vmatprep.subr.mxu0 0.0
      %977 = vmatpush1.msra.mxu0 0.0
      %978 = vmatprep.subr.mxu0 0.0
      %979 = vmatpush1.msra.mxu0 0.0
      %980 = vmatprep.subr.mxu0 0.0
      %981 = vmatpush1.msra.mxu0 0.0
      %982 = vmatprep.subr.mxu0 0.0
      %983 = vmatpush1.msra.mxu0 0.0
      %984 = vmatprep.subr.mxu0 0.0
      %985 = vmatpush1.msra.mxu0 0.0
      %986 = vmatprep.subr.mxu0 0.0
      %987 = vmatpush1.msra.mxu0 0.0
      %988 = vmatprep.subr.mxu0 0.0
      %989 = vmatpush1.msra.mxu0 0.0
      %990 = vmatprep.subr.mxu0 0.0
      %991 = vmatpush1.msra.mxu0 0.0
      %992 = vmatprep.subr.mxu0 0.0
      %993 = vmatpush1.msra.mxu0 0.0
      %994 = vmatprep.subr.mxu0 0.0
      %995 = vmatpush1.msra.mxu0 0.0
      %996 = vmatprep.subr.mxu0 0.0
      %997 = vmatpush1.msra.mxu0 0.0
      %998 = vmatprep.subr.mxu0 0.0
      %999 = vmatpush1.msra.mxu0 0.0
      %1000 = vmatprep.subr.mxu0 0.0
      %1001 = vmatpush1.msra.mxu0 0.0
      %1002 = vmatprep.subr.mxu0 0.0
      %1003 = vmatpush1.msra.mxu0 0.0
      %1004 = vmatprep.subr.mxu0 0.0
      %1005 = vmatpush1.msra.mxu0 0.0
      %1006 = vmatprep.subr.mxu0 0.0
      %1007 = vmatpush1.msra.mxu0 0.0
      %1008 = vmatprep.subr.mxu0 0.0
      %1009 = vmatpush1.msra.mxu0 0.0
      %1010 = vmatprep.mubr.f32.mxu0 0.0
      %1011 = vmatmul.mubr.f32.gmra.mrb[0].mxu0 %v660
      %v1012 = vpop.f32.mrb[0].mxu0
      %v1013 = vadd.f32 %v656, %v1012
      %v1014 = vpop.f32.mrb[0].mxu0
      %1015 = vdwg.mxu0
      %v1016 = vmax.f32 %v729, 0.0
      %v1017 = vmax.f32 %v731, 0.0
      %v1018 = vmax.f32 %v800, 0.0
      %v1019 = vmax.f32 %v802, 0.0
      %v1020 = vmax.f32 %v871, 0.0
      %v1021 = vmax.f32 %v873, 0.0
      %v1022 = vmax.f32 %v942, 0.0
      %v1023 = vmax.f32 %v944, 0.0
      %v1024 = vmax.f32 %v1013, 0.0
      %v1025 = vmin.f32 %v1016, 0.5
      %v1026 = vmin.f32 %v1017, 0.5
      %v1027 = vmin.f32 %v1018, 0.5
      %v1028 = vmin.f32 %v1019, 0.5
      %v1029 = vmin.f32 %v1020, 0.5
      %v1030 = vmin.f32 %v1021, 0.5
      %v1031 = vmin.f32 %v1022, 0.5
      %v1032 = vmin.f32 %v1023, 0.5
      %v1033 = vmin.f32 %v1024, 0.5
      %1034 = vst [vmem:[%s170] sm:$0xff] %v1025
      %1035 = vst [vmem:[%s170 + $0x8] sm:$0xff] %v1026
      %1036 = vst [vmem:[%s170 + $0x10] sm:$0xff] %v1027
      %1037 = vst [vmem:[%s170 + $0x18] sm:$0xff] %v1028
      %1038 = vst [vmem:[%s170 + $0x20] sm:$0xff] %v1029
      %1039 = vst [vmem:[%s170 + $0x28] sm:$0xff] %v1030
      %1040 = vst [vmem:[%s170 + $0x30] sm:$0xff] %v1031
      %1041 = vst [vmem:[%s170 + $0x38] sm:$0xff] %v1032
      %1042 = vst.msk [vmem:[%s170 + $0x40] sm:$0xff] %vm189, %v1033
      %p1043 = scmp.lt.s32.totalorder %s14, 1
      %s1044 = scalar_select %p1043, %s14, 1
      %s1045 = smul.addr %s1044, 9
      %s1046 = smul.addr %s1045, 8
      %s1047 = scalar_lea.vmem %s3, %s1046
      // Predicated region
      $region33: #{conv_transpose_fused.1} parent=31 // pred_check
        %p1048 = pneg %p100
      $region34: #{conv_transpose_fused.1} parent=31 // pred_check_branch
        %1050 = sbr.rel (%p1048) target = $region36
      $region35: #{conv_transpose_fused.1} parent=31 // pred_region
        _
      $region36: #{conv_transpose_fused.1} parent=31 // pred_fallthru
        _
    $region32: #{conv_transpose_fused.1} parent=5 // pred_fallthru
      _
    %p1051 = scmp.le.s32.totalorder 2, %s9
    // Predicated region
    $region37: #{conv_transpose_fused.1} parent=5 // pred_check
      %p1052 = pneg %p1051
    $region38: #{conv_transpose_fused.1} parent=5 // pred_check_branch
      %1054 = sbr.rel (%p1052) target = $region40
    $region39: #{conv_transpose_fused.1} parent=5 // pred_region
      %s1055 = ssub.s32 %s9, 2
      // Predicated region
      $region41: #{conv_transpose_fused.1} parent=39 // pred_check
        %p1056 = pneg %p106
      $region42: #{conv_transpose_fused.1} parent=39 // pred_check_branch
        %1058 = sbr.rel (%p1056) target = $region44
      $region43: #{conv_transpose_fused.1} parent=39 // pred_region
        %p1059 = scmp.lt.s32.totalorder %s15, 1
        %s1060 = scalar_select %p1059, %s15, 1
        %s1061 = smul.addr %s1060, 9
        %s1062 = smul.addr %s1061, 8
        %s1063 = scalar_lea.vmem %s3, %s1062
      $region44: #{conv_transpose_fused.1} parent=39 // pred_fallthru
        _
    $region40: #{conv_transpose_fused.1} parent=5 // pred_fallthru
      _
  $region6: #{conv_transpose_fused.1} parent=0 // loop_footer
    %s13 = sadd.s32 1, %s9
  $region7: #{conv_transpose_fused.1} parent=0 // loop_footer_branch
    %8 = sbr.rel target = $region3
  $region8: #{conv_transpose_fused.1} parent=0 // loop_exit
    _

</llo_original>
